<compile_context>
chip_gen: v7x
topology: tpu7x:2x2x1
jax: 0.10.0
libtpu: 0.0.40
codegen_flags: <defaults>
</compile_context>

<pallas_src>
import jax
import jax.numpy as jnp
from jax.experimental import pallas as pl
from jax.experimental.pallas import tpu as pltpu

N_NODES = 16      # graph nodes
HIDDEN = 32       # hidden_size (BERT hidden in the original module)
NUM_RELS = 10     # num_rels
NUM_LAYERS = 2    # config.num_layers
BATCH = 2         # number of (subj, obj) relation instances
ALPHA = 0.5       # config.alpha

RH = NUM_RELS * HIDDEN          # 320  (bilinear lane width)
LHS_W = RH + 2 * HIDDEN         # 384  (fused scoring-matmul contraction width)

_VMEM = pltpu.MemorySpace.VMEM
_SMEM = pltpu.MemorySpace.SMEM


# ----------------------------------------------------------------------------
# Fused REGNN forward kernel.
#   VMEM inputs : node_slab(N+2B,H) f32   rows [feat | subj_rep | obj_rep]
#                 a_hat(N,N) bf16
#                 gnn(L,H+1,H) bf16       [l,:H,:]=W_l, [l,H,:]=b_l
#                 w1_2d(H,R*H) bf16       W1 transposed to (H,R,H) and flattened
#                 score_rhs(R*H+2H+1,R) bf16  rows [SEL | W2a | W2b | (b1+b2)]
#   SMEM inputs : idx(3B,) int32  [subj_idxs | obj_idxs | target] ; loss1(1,) f32
#   outputs     : scores(B,R) f32 ; loss(1,1) f32
# ----------------------------------------------------------------------------
def _regnn_fused_kernel(node_ref, a_ref, gnn_ref, w1_ref, rhs_ref,
                        idx_ref, loss1_ref, scores_ref, loss_ref):
    # ---- scatter: feat[subj_idxs] = subj_rep ; feat[obj_idxs] = obj_rep  (obj wins ties,
    #      same order as the PyTorch in-place writes). Pure VPU selects via node-id iota. ----
    x = node_ref[pl.ds(0, N_NODES), :]                                   # (N, H) f32
    node_ids = jax.lax.broadcasted_iota(jnp.int32, (N_NODES, 1), 0)      # (N, 1)
    for b in range(BATCH):                                               # subj writes
        x = jnp.where(node_ids == idx_ref[b],
                      node_ref[pl.ds(N_NODES + b, 1), :], x)
    for b in range(BATCH):                                               # obj writes (last)
        x = jnp.where(node_ids == idx_ref[BATCH + b],
                      node_ref[pl.ds(N_NODES + BATCH + b, 1), :], x)

    # ---- GraphConv layers (norm='both', normalization baked into a_hat):
    #      x <- A_hat @ (x @ W_l) + b_l ; bf16 MXU operands, f32 accumulation. ----
    a = a_ref[...]                                                       # (N, N) bf16
    xb = x.astype(jnp.bfloat16)
    for l in range(NUM_LAYERS):
        wl = gnn_ref[l]                                                  # (H+1, H) bf16
        w = wl[0:HIDDEN, :]
        bvec = wl[HIDDEN:HIDDEN + 1, :].astype(jnp.float32)              # (1, H)
        xw = jnp.dot(xb, w, preferred_element_type=jnp.float32)          # (N, H) f32
        x = jnp.dot(a, xw.astype(jnp.bfloat16),
                    preferred_element_type=jnp.float32) + bvec           # (N, H) f32
        xb = x.astype(jnp.bfloat16)

    # ---- gather g_rep[subj_idxs] / g_rep[obj_idxs] with ONE one-hot matmul
    #      (node ids are unique, so the 0/1 matmul is an exact row select). ----
    row_ids = jax.lax.broadcasted_iota(jnp.int32, (2 * BATCH, N_NODES), 0)
    col_ids = jax.lax.broadcasted_iota(jnp.int32, (2 * BATCH, N_NODES), 1)
    onehot = jnp.zeros((2 * BATCH, N_NODES), jnp.float32)
    for k in range(2 * BATCH):
        hit = jnp.logical_and(row_ids == k, col_ids == idx_ref[k])
        onehot = jnp.where(hit, 1.0, onehot)
    gathered = jnp.dot(onehot.astype(jnp.bfloat16), xb,
                       preferred_element_type=jnp.float32)               # (2B, H) f32
    subj = gathered[0:BATCH, :]                                          # (B, H)
    obj = gathered[BATCH:2 * BATCH, :]                                   # (B, H)

    # ---- relation scoring, score_type='both', two lane-dense MXU ops:
    #      U = subj @ W1_2d ; V = U * tile(obj, R)
    #      scores = [V | subj | obj] @ [SEL; W2a; W2b] + (b1 + b2) ----
    u = jnp.dot(subj.astype(jnp.bfloat16), w1_ref[...],
                preferred_element_type=jnp.float32)                      # (B, R*H)
    obj_tiled = jnp.concatenate([obj] * NUM_RELS, axis=1)                # (B, R*H)
    v = u * obj_tiled
    big_lhs = jnp.concatenate([v, subj, obj], axis=1)                    # (B, R*H + 2H)
    scores = jnp.dot(big_lhs.astype(jnp.bfloat16),
                     rhs_ref[pl.ds(0, LHS_W), :],
                     preferred_element_type=jnp.float32)                 # (B, R)
    scores = scores + rhs_ref[pl.ds(LHS_W, 1), :].astype(jnp.float32)    # + folded bias
    scores_ref[...] = scores

    # ---- cross entropy (mean over batch) + loss mix, fully in-kernel, f32 ----
    m = jnp.max(scores, axis=-1, keepdims=True)                          # (B, 1)
    lse = m + jnp.log(jnp.sum(jnp.exp(scores - m), axis=-1, keepdims=True))
    brow = jax.lax.broadcasted_iota(jnp.int32, (BATCH, NUM_RELS), 0)
    bcol = jax.lax.broadcasted_iota(jnp.int32, (BATCH, NUM_RELS), 1)
    tgt_mask = jnp.zeros((BATCH, NUM_RELS), jnp.float32)
    for b in range(BATCH):
        hit = jnp.logical_and(brow == b, bcol == idx_ref[2 * BATCH + b])
        tgt_mask = jnp.where(hit, 1.0, tgt_mask)
    tgt = jnp.sum(scores * tgt_mask, axis=-1, keepdims=True)             # (B, 1)
    loss2 = jnp.sum(lse - tgt, axis=0, keepdims=True) * (1.0 / BATCH)    # (1, 1)
    loss_ref[...] = ALPHA * loss1_ref[0] + (1.0 - ALPHA) * loss2


def _cost_estimate():
    gcn = NUM_LAYERS * (2 * N_NODES * HIDDEN * HIDDEN + 2 * N_NODES * N_NODES * HIDDEN)
    gather = 2 * (2 * BATCH) * N_NODES * HIDDEN
    score = 2 * BATCH * HIDDEN * RH + 2 * BATCH * LHS_W * NUM_RELS
    misc = 4 * BATCH * RH + 8 * BATCH * NUM_RELS + 6 * BATCH * N_NODES * HIDDEN
    flops = gcn + gather + score + misc
    trans = BATCH * NUM_RELS + BATCH
    bytes_in = (4 * (N_NODES + 2 * BATCH) * HIDDEN                 # node_slab f32
                + 2 * N_NODES * N_NODES                            # a_hat bf16
                + 2 * NUM_LAYERS * (HIDDEN + 1) * HIDDEN           # gnn slab bf16
                + 2 * HIDDEN * RH                                  # w1_2d bf16
                + 2 * (LHS_W + 1) * NUM_RELS                       # score_rhs bf16
                + 4 * (3 * BATCH + 1))                             # smem scalars
    bytes_out = 4 * (BATCH * NUM_RELS + 1)
    return pl.CostEstimate(flops=flops, transcendentals=trans,
                           bytes_accessed=bytes_in + bytes_out)


_COST = _cost_estimate()


@jax.jit
def regnn_forward(packed, a_hat, feat, subj_rep, obj_rep,
                  subj_idxs, obj_idxs, target, loss1):
    node_slab = jnp.concatenate([feat, subj_rep, obj_rep], axis=0).astype(jnp.float32)
    idx_all = jnp.concatenate([subj_idxs, obj_idxs, target]).astype(jnp.int32)
    loss1_1d = jnp.asarray(loss1, jnp.float32).reshape(1)
    scores, loss = pl.pallas_call(
        _regnn_fused_kernel,
        out_shape=(jax.ShapeDtypeStruct((BATCH, NUM_RELS), jnp.float32),
                   jax.ShapeDtypeStruct((1, 1), jnp.float32)),
        in_specs=[pl.BlockSpec(memory_space=_VMEM)] * 5
                 + [pl.BlockSpec(memory_space=_SMEM)] * 2,
        out_specs=(pl.BlockSpec(memory_space=_VMEM),
                   pl.BlockSpec(memory_space=_VMEM)),
        cost_estimate=_COST,
    )(node_slab, a_hat.astype(jnp.bfloat16),
      packed["gnn"], packed["w1_2d"], packed["score_rhs"],
      idx_all, loss1_1d)
    return loss[0, 0], scores


# ----------------------------------------------------------------------------
# Pure-JAX reference (f32, HIGHEST precision) for the correctness check.
# ----------------------------------------------------------------------------
def regnn_reference(raw, a_hat, feat, subj_rep, obj_rep,
                    subj_idxs, obj_idxs, target, loss1):
    hi = jax.lax.Precision.HIGHEST
    x = feat.at[subj_idxs].set(subj_rep).at[obj_idxs].set(obj_rep)
    for l in range(NUM_LAYERS):
        x = jnp.dot(a_hat, jnp.dot(x, raw["gnn_w"][l], precision=hi),
                    precision=hi) + raw["gnn_b"][l]
    subj, obj = x[subj_idxs], x[obj_idxs]
    scores = jnp.einsum("bi,rij,bj->br", subj, raw["w1"], obj, precision=hi) + raw["b1"]
    scores = scores + jnp.dot(jnp.concatenate([subj, obj], axis=1),
                              raw["w2"].T, precision=hi) + raw["b2"]
    lse = jax.scipy.special.logsumexp(scores, axis=-1)
    nll = lse - scores[jnp.arange(BATCH), target]
    loss2 = jnp.mean(nll)
    return ALPHA * loss1 + (1.0 - ALPHA) * loss2, scores


def make_raw_params(key):
    ks = jax.random.split(key, 6)
    gnn_w = jax.random.normal(ks[0], (NUM_LAYERS, HIDDEN, HIDDEN), jnp.float32) * 0.1
    gnn_b = jax.random.normal(ks[1], (NUM_LAYERS, 1, HIDDEN), jnp.float32) * 0.1
    # nn.Bilinear(H, H, R): weight (R, H, H), bias (R,)
    w1 = jax.random.normal(ks[2], (NUM_RELS, HIDDEN, HIDDEN), jnp.float32) * 0.05
    b1 = jax.random.normal(ks[3], (NUM_RELS,), jnp.float32) * 0.05
    # nn.Linear(2H, R): weight (R, 2H), bias (R,)
    w2 = jax.random.normal(ks[4], (NUM_RELS, 2 * HIDDEN), jnp.float32) * 0.05
    b2 = jax.random.normal(ks[5], (NUM_RELS,), jnp.float32) * 0.05
    return {"gnn_w": gnn_w, "gnn_b": gnn_b, "w1": w1, "b1": b1, "w2": w2, "b2": b2}


def pack_params(raw):
    """Host-side packing into 3 VMEM slabs (cuts input DMA count, bf16 MXU operands)."""
    gnn = jnp.concatenate([raw["gnn_w"], raw["gnn_b"]], axis=1).astype(jnp.bfloat16)
    # W1_2d[i, r*H + j] = W1[r, i, j]
    w1_2d = jnp.transpose(raw["w1"], (1, 0, 2)).reshape(HIDDEN, RH).astype(jnp.bfloat16)
    sel = jnp.repeat(jnp.eye(NUM_RELS, dtype=jnp.float32), HIDDEN, axis=0)     # (R*H, R)
    w2a = jnp.transpose(raw["w2"][:, :HIDDEN])                                 # (H, R)
    w2b = jnp.transpose(raw["w2"][:, HIDDEN:])                                 # (H, R)
    bias = (raw["b1"] + raw["b2"])[None, :]                                    # (1, R)
    score_rhs = jnp.concatenate([sel, w2a, w2b, bias], axis=0).astype(jnp.bfloat16)
    return {"gnn": gnn, "w1_2d": w1_2d, "score_rhs": score_rhs}


def make_graph(key):
    # Random adjacency with self loops, symmetric ('both') normalization baked in.
    a = (jax.random.uniform(key, (N_NODES, N_NODES)) < 0.25).astype(jnp.float32)
    a = jnp.maximum(a, a.T)
    a = a + jnp.eye(N_NODES, dtype=jnp.float32)
    deg = jnp.sum(a, axis=1)
    d_inv_sqrt = 1.0 / jnp.sqrt(deg)
    return a * d_inv_sqrt[:, None] * d_inv_sqrt[None, :]


if __name__ == "__main__":
    key = jax.random.PRNGKey(0)
    k_par, k_graph, k_feat, k_subj, k_obj = jax.random.split(key, 5)

    raw = make_raw_params(k_par)
    packed = pack_params(raw)
    a_hat = make_graph(k_graph)
    feat = jax.random.normal(k_feat, (N_NODES, HIDDEN), jnp.float32)

    # Stand-ins for the BertRE sub-model outputs.
    subj_rep = jax.random.normal(k_subj, (BATCH, HIDDEN), jnp.float32)
    obj_rep = jax.random.normal(k_obj, (BATCH, HIDDEN), jnp.float32)
    loss1 = jnp.float32(0.7)

    subj_idxs = jnp.array([0, 3], dtype=jnp.int32)
    obj_idxs = jnp.array([5, 9], dtype=jnp.int32)
    target = jnp.array([2, 7], dtype=jnp.int32)

    loss, scores = regnn_forward(packed, a_hat, feat, subj_rep, obj_rep,
                                 subj_idxs, obj_idxs, target, loss1)
    jax.block_until_ready((loss, scores))

    # Correctness check against the pure-JAX f32 reference (bf16 MXU operands in-kernel).
    ref_loss, ref_scores = regnn_reference(raw, a_hat, feat, subj_rep, obj_rep,
                                           subj_idxs, obj_idxs, target, loss1)
    assert scores.shape == (BATCH, NUM_RELS)
    assert loss.shape == () and jnp.isfinite(loss)
    assert bool(jnp.allclose(scores, ref_scores, atol=2e-2, rtol=2e-2)), "scores mismatch"
    assert bool(jnp.allclose(loss, ref_loss, atol=2e-2, rtol=2e-2)), "loss mismatch"
    print("KERNEL_OK")
</pallas_src>

<mosaic_0001>
module attributes {stable_mosaic.version = 11 : i64} {
  func.func @_regnn_fused_kernel(%arg0: memref<20x32xf32, #tpu.memory_space<vmem>>, %arg1: memref<16x16xbf16, #tpu.memory_space<vmem>>, %arg2: memref<2x33x32xbf16, #tpu.memory_space<vmem>>, %arg3: memref<32x320xbf16, #tpu.memory_space<vmem>>, %arg4: memref<385x10xbf16, #tpu.memory_space<vmem>>, %arg5: memref<6xi32, #tpu.memory_space<smem>>, %arg6: memref<1xf32, #tpu.memory_space<smem>>, %arg7: memref<2x10xf32, #tpu.memory_space<vmem>>, %arg8: memref<1x1xf32, #tpu.memory_space<vmem>>) attributes {dimension_semantics = [], scalar_prefetch = 0 : i64, scratch_operands = 0 : i64, tpu.core_type = #tpu.core_type<tc>} {
    %c0 = arith.constant 0 : index
    %c0_0 = arith.constant 0 : index
    %0 = vector.load %arg0[%c0, %c0_0] : memref<20x32xf32, #tpu.memory_space<vmem>>, vector<16x32xf32>
    %1 = tpu.iota {dimensions = array<i32: 0>} : vector<16x1xi32>
    %c0_1 = arith.constant 0 : index
    %2 = memref.load %arg5[%c0_1] : memref<6xi32, #tpu.memory_space<smem>>
    %3 = vector.broadcast %2 : i32 to vector<16x1xi32>
    %4 = arith.cmpi eq, %1, %3 : vector<16x1xi32>
    %c16 = arith.constant 16 : index
    %c0_2 = arith.constant 0 : index
    %5 = vector.load %arg0[%c16, %c0_2] : memref<20x32xf32, #tpu.memory_space<vmem>>, vector<1x32xf32>
    %6 = vector.shape_cast %4 : vector<16x1xi1> to vector<16x1xi1>
    %7 = vector.broadcast %6 : vector<16x1xi1> to vector<16x32xi1>
    %8 = vector.shape_cast %5 : vector<1x32xf32> to vector<1x32xf32>
    %9 = vector.broadcast %8 : vector<1x32xf32> to vector<16x32xf32>
    %10 = arith.select %7, %9, %0 : vector<16x32xi1>, vector<16x32xf32>
    %c1 = arith.constant 1 : index
    %11 = memref.load %arg5[%c1] : memref<6xi32, #tpu.memory_space<smem>>
    %12 = vector.broadcast %11 : i32 to vector<16x1xi32>
    %13 = arith.cmpi eq, %1, %12 : vector<16x1xi32>
    %c17 = arith.constant 17 : index
    %c0_3 = arith.constant 0 : index
    %14 = vector.load %arg0[%c17, %c0_3] : memref<20x32xf32, #tpu.memory_space<vmem>>, vector<1x32xf32>
    %15 = vector.shape_cast %13 : vector<16x1xi1> to vector<16x1xi1>
    %16 = vector.broadcast %15 : vector<16x1xi1> to vector<16x32xi1>
    %17 = vector.shape_cast %14 : vector<1x32xf32> to vector<1x32xf32>
    %18 = vector.broadcast %17 : vector<1x32xf32> to vector<16x32xf32>
    %19 = arith.select %16, %18, %10 : vector<16x32xi1>, vector<16x32xf32>
    %c2 = arith.constant 2 : index
    %20 = memref.load %arg5[%c2] : memref<6xi32, #tpu.memory_space<smem>>
    %21 = vector.broadcast %20 : i32 to vector<16x1xi32>
    %22 = arith.cmpi eq, %1, %21 : vector<16x1xi32>
    %c18 = arith.constant 18 : index
    %c0_4 = arith.constant 0 : index
    %23 = vector.load %arg0[%c18, %c0_4] : memref<20x32xf32, #tpu.memory_space<vmem>>, vector<1x32xf32>
    %24 = vector.shape_cast %22 : vector<16x1xi1> to vector<16x1xi1>
    %25 = vector.broadcast %24 : vector<16x1xi1> to vector<16x32xi1>
    %26 = vector.shape_cast %23 : vector<1x32xf32> to vector<1x32xf32>
    %27 = vector.broadcast %26 : vector<1x32xf32> to vector<16x32xf32>
    %28 = arith.select %25, %27, %19 : vector<16x32xi1>, vector<16x32xf32>
    %c3 = arith.constant 3 : index
    %29 = memref.load %arg5[%c3] : memref<6xi32, #tpu.memory_space<smem>>
    %30 = vector.broadcast %29 : i32 to vector<16x1xi32>
    %31 = arith.cmpi eq, %1, %30 : vector<16x1xi32>
    %c19 = arith.constant 19 : index
    %c0_5 = arith.constant 0 : index
    %32 = vector.load %arg0[%c19, %c0_5] : memref<20x32xf32, #tpu.memory_space<vmem>>, vector<1x32xf32>
    %33 = vector.shape_cast %31 : vector<16x1xi1> to vector<16x1xi1>
    %34 = vector.broadcast %33 : vector<16x1xi1> to vector<16x32xi1>
    %35 = vector.shape_cast %32 : vector<1x32xf32> to vector<1x32xf32>
    %36 = vector.broadcast %35 : vector<1x32xf32> to vector<16x32xf32>
    %37 = arith.select %34, %36, %28 : vector<16x32xi1>, vector<16x32xf32>
    %c0_6 = arith.constant 0 : index
    %c0_7 = arith.constant 0 : index
    %38 = vector.load %arg1[%c0_6, %c0_7] : memref<16x16xbf16, #tpu.memory_space<vmem>>, vector<16x16xbf16>
    %39 = arith.truncf %37 : vector<16x32xf32> to vector<16x32xbf16>
    %c0_8 = arith.constant 0 : index
    %c0_9 = arith.constant 0 : index
    %c0_10 = arith.constant 0 : index
    %40 = vector.load %arg2[%c0_8, %c0_9, %c0_10] : memref<2x33x32xbf16, #tpu.memory_space<vmem>>, vector<1x33x32xbf16>
    %41 = vector.shape_cast %40 : vector<1x33x32xbf16> to vector<33x32xbf16>
    %42 = vector.extract_strided_slice %41 {offsets = [0, 0], sizes = [32, 32], strides = [1, 1]} : vector<33x32xbf16> to vector<32x32xbf16>
    %43 = vector.extract_strided_slice %41 {offsets = [32, 0], sizes = [1, 32], strides = [1, 1]} : vector<33x32xbf16> to vector<1x32xbf16>
    %44 = arith.extf %43 : vector<1x32xbf16> to vector<1x32xf32>
    %cst = arith.constant dense<0.000000e+00> : vector<16x32xf32>
    %45 = tpu.matmul %39, %42, %cst {dimension_numbers = #tpu.dot_dimension_numbers<[1], [0], [0], [1], [0, 0, 1, 1], [], []>} : vector<16x32xbf16>, vector<32x32xbf16>, vector<16x32xf32> -> vector<16x32xf32>
    %46 = arith.truncf %45 : vector<16x32xf32> to vector<16x32xbf16>
    %cst_11 = arith.constant dense<0.000000e+00> : vector<16x32xf32>
    %47 = tpu.matmul %38, %46, %cst_11 {dimension_numbers = #tpu.dot_dimension_numbers<[1], [0], [0], [1], [0, 0, 1, 1], [], []>} : vector<16x16xbf16>, vector<16x32xbf16>, vector<16x32xf32> -> vector<16x32xf32>
    %48 = vector.broadcast %44 : vector<1x32xf32> to vector<16x32xf32>
    %49 = arith.addf %47, %48 : vector<16x32xf32>
    %50 = arith.truncf %49 : vector<16x32xf32> to vector<16x32xbf16>
    %c1_12 = arith.constant 1 : index
    %c0_13 = arith.constant 0 : index
    %c0_14 = arith.constant 0 : index
    %51 = vector.load %arg2[%c1_12, %c0_13, %c0_14] : memref<2x33x32xbf16, #tpu.memory_space<vmem>>, vector<1x33x32xbf16>
    %52 = vector.shape_cast %51 : vector<1x33x32xbf16> to vector<33x32xbf16>
    %53 = vector.extract_strided_slice %52 {offsets = [0, 0], sizes = [32, 32], strides = [1, 1]} : vector<33x32xbf16> to vector<32x32xbf16>
    %54 = vector.extract_strided_slice %52 {offsets = [32, 0], sizes = [1, 32], strides = [1, 1]} : vector<33x32xbf16> to vector<1x32xbf16>
    %55 = arith.extf %54 : vector<1x32xbf16> to vector<1x32xf32>
    %cst_15 = arith.constant dense<0.000000e+00> : vector<16x32xf32>
    %56 = tpu.matmul %50, %53, %cst_15 {dimension_numbers = #tpu.dot_dimension_numbers<[1], [0], [0], [1], [0, 0, 1, 1], [], []>} : vector<16x32xbf16>, vector<32x32xbf16>, vector<16x32xf32> -> vector<16x32xf32>
    %57 = arith.truncf %56 : vector<16x32xf32> to vector<16x32xbf16>
    %cst_16 = arith.constant dense<0.000000e+00> : vector<16x32xf32>
    %58 = tpu.matmul %38, %57, %cst_16 {dimension_numbers = #tpu.dot_dimension_numbers<[1], [0], [0], [1], [0, 0, 1, 1], [], []>} : vector<16x16xbf16>, vector<16x32xbf16>, vector<16x32xf32> -> vector<16x32xf32>
    %59 = vector.broadcast %55 : vector<1x32xf32> to vector<16x32xf32>
    %60 = arith.addf %58, %59 : vector<16x32xf32>
    %61 = arith.truncf %60 : vector<16x32xf32> to vector<16x32xbf16>
    %62 = tpu.iota {dimensions = array<i32: 0>} : vector<4x16xi32>
    %63 = tpu.iota {dimensions = array<i32: 1>} : vector<4x16xi32>
    %cst_17 = arith.constant 0.000000e+00 : f32
    %64 = vector.broadcast %cst_17 : f32 to vector<4x16xf32>
    %c0_i32 = arith.constant 0 : i32
    %65 = vector.broadcast %c0_i32 : i32 to vector<4x16xi32>
    %66 = arith.cmpi eq, %62, %65 : vector<4x16xi32>
    %c0_18 = arith.constant 0 : index
    %67 = memref.load %arg5[%c0_18] : memref<6xi32, #tpu.memory_space<smem>>
    %68 = vector.broadcast %67 : i32 to vector<4x16xi32>
    %69 = arith.cmpi eq, %63, %68 : vector<4x16xi32>
    %70 = arith.andi %66, %69 : vector<4x16xi1>
    %cst_19 = arith.constant 1.000000e+00 : f32
    %71 = vector.broadcast %cst_19 : f32 to vector<4x16xf32>
    %72 = arith.select %70, %71, %64 : vector<4x16xi1>, vector<4x16xf32>
    %c1_i32 = arith.constant 1 : i32
    %73 = vector.broadcast %c1_i32 : i32 to vector<4x16xi32>
    %74 = arith.cmpi eq, %62, %73 : vector<4x16xi32>
    %c1_20 = arith.constant 1 : index
    %75 = memref.load %arg5[%c1_20] : memref<6xi32, #tpu.memory_space<smem>>
    %76 = vector.broadcast %75 : i32 to vector<4x16xi32>
    %77 = arith.cmpi eq, %63, %76 : vector<4x16xi32>
    %78 = arith.andi %74, %77 : vector<4x16xi1>
    %cst_21 = arith.constant 1.000000e+00 : f32
    %79 = vector.broadcast %cst_21 : f32 to vector<4x16xf32>
    %80 = arith.select %78, %79, %72 : vector<4x16xi1>, vector<4x16xf32>
    %c2_i32 = arith.constant 2 : i32
    %81 = vector.broadcast %c2_i32 : i32 to vector<4x16xi32>
    %82 = arith.cmpi eq, %62, %81 : vector<4x16xi32>
    %c2_22 = arith.constant 2 : index
    %83 = memref.load %arg5[%c2_22] : memref<6xi32, #tpu.memory_space<smem>>
    %84 = vector.broadcast %83 : i32 to vector<4x16xi32>
    %85 = arith.cmpi eq, %63, %84 : vector<4x16xi32>
    %86 = arith.andi %82, %85 : vector<4x16xi1>
    %cst_23 = arith.constant 1.000000e+00 : f32
    %87 = vector.broadcast %cst_23 : f32 to vector<4x16xf32>
    %88 = arith.select %86, %87, %80 : vector<4x16xi1>, vector<4x16xf32>
    %c3_i32 = arith.constant 3 : i32
    %89 = vector.broadcast %c3_i32 : i32 to vector<4x16xi32>
    %90 = arith.cmpi eq, %62, %89 : vector<4x16xi32>
    %c3_24 = arith.constant 3 : index
    %91 = memref.load %arg5[%c3_24] : memref<6xi32, #tpu.memory_space<smem>>
    %92 = vector.broadcast %91 : i32 to vector<4x16xi32>
    %93 = arith.cmpi eq, %63, %92 : vector<4x16xi32>
    %94 = arith.andi %90, %93 : vector<4x16xi1>
    %cst_25 = arith.constant 1.000000e+00 : f32
    %95 = vector.broadcast %cst_25 : f32 to vector<4x16xf32>
    %96 = arith.select %94, %95, %88 : vector<4x16xi1>, vector<4x16xf32>
    %97 = arith.truncf %96 : vector<4x16xf32> to vector<4x16xbf16>
    %cst_26 = arith.constant dense<0.000000e+00> : vector<4x32xf32>
    %98 = tpu.matmul %97, %61, %cst_26 {dimension_numbers = #tpu.dot_dimension_numbers<[1], [0], [0], [1], [0, 0, 1, 1], [], []>} : vector<4x16xbf16>, vector<16x32xbf16>, vector<4x32xf32> -> vector<4x32xf32>
    %99 = vector.extract_strided_slice %98 {offsets = [0, 0], sizes = [2, 32], strides = [1, 1]} : vector<4x32xf32> to vector<2x32xf32>
    %100 = vector.extract_strided_slice %98 {offsets = [2, 0], sizes = [2, 32], strides = [1, 1]} : vector<4x32xf32> to vector<2x32xf32>
    %101 = arith.truncf %99 : vector<2x32xf32> to vector<2x32xbf16>
    %c0_27 = arith.constant 0 : index
    %c0_28 = arith.constant 0 : index
    %102 = vector.load %arg3[%c0_27, %c0_28] : memref<32x320xbf16, #tpu.memory_space<vmem>>, vector<32x320xbf16>
    %cst_29 = arith.constant dense<0.000000e+00> : vector<2x320xf32>
    %103 = tpu.matmul %101, %102, %cst_29 {dimension_numbers = #tpu.dot_dimension_numbers<[1], [0], [0], [1], [0, 0, 1, 1], [], []>} : vector<2x32xbf16>, vector<32x320xbf16>, vector<2x320xf32> -> vector<2x320xf32>
    %104 = tpu.concatenate %100, %100, %100, %100, %100, %100, %100, %100, %100, %100 in 1 : vector<2x32xf32>, vector<2x32xf32>, vector<2x32xf32>, vector<2x32xf32>, vector<2x32xf32>, vector<2x32xf32>, vector<2x32xf32>, vector<2x32xf32>, vector<2x32xf32>, vector<2x32xf32> -> vector<2x320xf32>
    %105 = arith.mulf %103, %104 : vector<2x320xf32>
    %106 = tpu.concatenate %105, %99, %100 in 1 : vector<2x320xf32>, vector<2x32xf32>, vector<2x32xf32> -> vector<2x384xf32>
    %107 = arith.truncf %106 : vector<2x384xf32> to vector<2x384xbf16>
    %c0_30 = arith.constant 0 : index
    %c0_31 = arith.constant 0 : index
    %108 = vector.load %arg4[%c0_30, %c0_31] : memref<385x10xbf16, #tpu.memory_space<vmem>>, vector<384x10xbf16>
    %cst_32 = arith.constant dense<0.000000e+00> : vector<2x10xf32>
    %109 = tpu.matmul %107, %108, %cst_32 {dimension_numbers = #tpu.dot_dimension_numbers<[1], [0], [0], [1], [0, 0, 1, 1], [], []>} : vector<2x384xbf16>, vector<384x10xbf16>, vector<2x10xf32> -> vector<2x10xf32>
    %c384 = arith.constant 384 : index
    %c0_33 = arith.constant 0 : index
    %110 = vector.load %arg4[%c384, %c0_33] : memref<385x10xbf16, #tpu.memory_space<vmem>>, vector<1x10xbf16>
    %111 = arith.extf %110 : vector<1x10xbf16> to vector<1x10xf32>
    %112 = vector.broadcast %111 : vector<1x10xf32> to vector<2x10xf32>
    %113 = arith.addf %109, %112 : vector<2x10xf32>
    %c0_34 = arith.constant 0 : index
    %c0_35 = arith.constant 0 : index
    %114 = vector.load %arg7[%c0_34, %c0_35] : memref<2x10xf32, #tpu.memory_space<vmem>>, vector<2x10xf32>
    tpu.vector_store %arg7[%c0_34, %c0_35], %113 {strides = array<i32>} : memref<2x10xf32, #tpu.memory_space<vmem>>, vector<2x10xf32>,
    %cst_36 = arith.constant dense<0xFF800000> : vector<2xf32>
    %115 = vector.multi_reduction <maximumf>, %113, %cst_36 [1] : vector<2x10xf32> to vector<2xf32>
    %116 = vector.shape_cast %115 : vector<2xf32> to vector<2x1xf32>
    %117 = vector.broadcast %116 : vector<2x1xf32> to vector<2x10xf32>
    %118 = arith.subf %113, %117 : vector<2x10xf32>
    %119 = math.exp %118 : vector<2x10xf32>
    %cst_37 = arith.constant dense<0.000000e+00> : vector<2xf32>
    %120 = vector.multi_reduction <add>, %119, %cst_37 [1] : vector<2x10xf32> to vector<2xf32>
    %121 = vector.shape_cast %120 : vector<2xf32> to vector<2x1xf32>
    %122 = math.log %121 : vector<2x1xf32>
    %123 = arith.addf %116, %122 : vector<2x1xf32>
    %124 = tpu.iota {dimensions = array<i32: 0>} : vector<2x10xi32>
    %125 = tpu.iota {dimensions = array<i32: 1>} : vector<2x10xi32>
    %cst_38 = arith.constant 0.000000e+00 : f32
    %126 = vector.broadcast %cst_38 : f32 to vector<2x10xf32>
    %c0_i32_39 = arith.constant 0 : i32
    %127 = vector.broadcast %c0_i32_39 : i32 to vector<2x10xi32>
    %128 = arith.cmpi eq, %124, %127 : vector<2x10xi32>
    %c4 = arith.constant 4 : index
    %129 = memref.load %arg5[%c4] : memref<6xi32, #tpu.memory_space<smem>>
    %130 = vector.broadcast %129 : i32 to vector<2x10xi32>
    %131 = arith.cmpi eq, %125, %130 : vector<2x10xi32>
    %132 = arith.andi %128, %131 : vector<2x10xi1>
    %cst_40 = arith.constant 1.000000e+00 : f32
    %133 = vector.broadcast %cst_40 : f32 to vector<2x10xf32>
    %134 = arith.select %132, %133, %126 : vector<2x10xi1>, vector<2x10xf32>
    %c1_i32_41 = arith.constant 1 : i32
    %135 = vector.broadcast %c1_i32_41 : i32 to vector<2x10xi32>
    %136 = arith.cmpi eq, %124, %135 : vector<2x10xi32>
    %c5 = arith.constant 5 : index
    %137 = memref.load %arg5[%c5] : memref<6xi32, #tpu.memory_space<smem>>
    %138 = vector.broadcast %137 : i32 to vector<2x10xi32>
    %139 = arith.cmpi eq, %125, %138 : vector<2x10xi32>
    %140 = arith.andi %136, %139 : vector<2x10xi1>
    %cst_42 = arith.constant 1.000000e+00 : f32
    %141 = vector.broadcast %cst_42 : f32 to vector<2x10xf32>
    %142 = arith.select %140, %141, %134 : vector<2x10xi1>, vector<2x10xf32>
    %143 = arith.mulf %113, %142 : vector<2x10xf32>
    %cst_43 = arith.constant dense<0.000000e+00> : vector<2xf32>
    %144 = vector.multi_reduction <add>, %143, %cst_43 [1] : vector<2x10xf32> to vector<2xf32>
    %145 = vector.shape_cast %144 : vector<2xf32> to vector<2x1xf32>
    %146 = arith.subf %123, %145 : vector<2x1xf32>
    %cst_44 = arith.constant dense<0.000000e+00> : vector<1xf32>
    %147 = vector.multi_reduction <add>, %146, %cst_44 [0] : vector<2x1xf32> to vector<1xf32>
    %148 = vector.shape_cast %147 : vector<1xf32> to vector<1x1xf32>
    %cst_45 = arith.constant 5.000000e-01 : f32
    %149 = vector.broadcast %cst_45 : f32 to vector<1x1xf32>
    %150 = arith.mulf %148, %149 : vector<1x1xf32>
    %c0_46 = arith.constant 0 : index
    %151 = memref.load %arg6[%c0_46] : memref<1xf32, #tpu.memory_space<smem>>
    %cst_47 = arith.constant 5.000000e-01 : f32
    %152 = arith.mulf %cst_47, %151 : f32
    %cst_48 = arith.constant 5.000000e-01 : f32
    %153 = vector.broadcast %cst_48 : f32 to vector<1x1xf32>
    %154 = arith.mulf %153, %150 : vector<1x1xf32>
    %155 = vector.broadcast %152 : f32 to vector<1x1xf32>
    %156 = arith.addf %155, %154 : vector<1x1xf32>
    %c0_49 = arith.constant 0 : index
    %c0_50 = arith.constant 0 : index
    %157 = vector.load %arg8[%c0_49, %c0_50] : memref<1x1xf32, #tpu.memory_space<vmem>>, vector<1x1xf32>
    tpu.vector_store %arg8[%c0_49, %c0_50], %156 {strides = array<i32>} : memref<1x1xf32, #tpu.memory_space<vmem>>, vector<1x1xf32>,
    return
  }
}

</mosaic_0001>

<llo_original>
// kernel: regnn_forward.1
$region0: #{regnn_forward.1}
  #allocation0 [shape = 'u32[]', space=smem, size = 0x4, offset = 0x4, fixed_abs, tag = 'smem constant byte address 0x4 - core index']
  #allocation1 [shape = 'u32[144,128]{1,0:T(1,128)}', space=vmem, size = 0x12000, scoped, tag = 'internal scratch']
  #allocation2 [shape = 'f32[1]{0:T(128)S(6)}', space=smem, size = 0x200, scoped, tag = 'scoped memory for regnn_forward.1']
  %s0 = inlined_call_operand.vmem [shape: f32[20,32], index: 0, kind: input, shape index: {}]
  %s1 = inlined_call_operand.vmem [shape: bf16[16,16], index: 1, kind: input, shape index: {}]
  %s2 = inlined_call_operand.vmem [shape: bf16[2,33,32], index: 2, kind: input, shape index: {}]
  %s3 = inlined_call_operand.vmem [shape: bf16[32,320], index: 3, kind: input, shape index: {}]
  %s4 = inlined_call_operand.vmem [shape: bf16[385,10], index: 4, kind: input, shape index: {}]
  %s5 = inlined_call_operand.vmem [shape: s32[6], index: 5, kind: input, shape index: {}]
  %s6 = inlined_call_operand.<no memory space> [shape: f32[1], index: 6, kind: input, shape index: {}]
  %s7 = inlined_call_operand.hbm [shape: f32[2,10], index: 7, kind: output, shape index: {0}]
  %s8 = inlined_call_operand.hbm [shape: f32[1,1], index: 8, kind: output, shape index: {1}]
  %9 = xla_tuple %s7, %s8
  %s10 = sld [smem:[#allocation0]]
  $region50: #{regnn_forward.1} parent=0
    _
  %s12 = ssub.s32 1, %s10
  %s13 = scalar_select 0, %s12, %s10
  %14 = sst [smem:[#allocation2]] %s6
  $region1: #{regnn_forward.1} parent=0
    #allocation3 [shape = 'u8[512]{0}', space=smem, size = 0x200, scoped, tag = 'input window, operand 5, single buffered']
    #allocation4 [shape = 's32[1]{0}', space=sflag, size = 0x4, scoped, tag = 'scoped memory for regnn_forward.1']
    #allocation5 [shape = 's32[1]{0}', space=sflag, size = 0x4, scoped, tag = 'scoped memory for regnn_forward.1']
    #allocation6 [shape = 'u8[1024]{0}', space=vmem, size = 0x400, scoped, tag = 'output window, operand 0, single buffered']
    #allocation7 [shape = 'u8[512]{0}', space=vmem, size = 0x400, scoped, tag = 'output window, operand 1, single buffered']
    #allocation8 [shape = 's32[1]{0}', space=sflag, size = 0x4, scoped, tag = 'scoped memory for regnn_forward.1']
    %15 = vsyncpa [#allocation5], 0
    %16 = vsyncpa [#allocation4], 0
    %17 = vsyncpa [#allocation8], 0
    // Predicated region
    $region2: #{regnn_forward.1} parent=1 // pred_check
      _
    $region3: #{regnn_forward.1} parent=1 // pred_check_branch
      %19 = sbr.rel (0) target = $region5
    $region4: #{regnn_forward.1} parent=1 // pred_region
      _
    $region5: #{regnn_forward.1} parent=1 // pred_fallthru
      _
    // Predicated region
    $region6: #{regnn_forward.1} parent=1 // pred_check
      _
    $region7: #{regnn_forward.1} parent=1 // pred_check_branch
      %21 = sbr.rel (0) target = $region9
    $region8: #{regnn_forward.1} parent=1 // pred_region
      _
    $region9: #{regnn_forward.1} parent=1 // pred_fallthru
      _
    // Predicated region
    $region10: #{regnn_forward.1} parent=1 // pred_check
      _
    $region11: #{regnn_forward.1} parent=1 // pred_check_branch
      %23 = sbr.rel (0) target = $region13
    $region12: #{regnn_forward.1} parent=1 // pred_region
      _
    $region13: #{regnn_forward.1} parent=1 // pred_fallthru
      _
    // Predicated region
    $region14: #{regnn_forward.1} parent=1 // pred_check
      _
    $region15: #{regnn_forward.1} parent=1 // pred_check_branch
      %25 = sbr.rel (0) target = $region17
    $region16: #{regnn_forward.1} parent=1 // pred_region
      _
    $region17: #{regnn_forward.1} parent=1 // pred_fallthru
      _
    // Predicated region
    $region18: #{regnn_forward.1} parent=1 // pred_check
      _
    $region19: #{regnn_forward.1} parent=1 // pred_check_branch
      %27 = sbr.rel (0) target = $region21
    $region20: #{regnn_forward.1} parent=1 // pred_region
      _
    $region21: #{regnn_forward.1} parent=1 // pred_fallthru
      _
    // Predicated region
    $region22: #{regnn_forward.1} parent=1 // pred_check
      _
    $region23: #{regnn_forward.1} parent=1 // pred_check_branch
      %29 = sbr.rel (0) target = $region25
    $region24: #{regnn_forward.1} parent=1 // pred_region
      %s31 = ssub.s32 16, 16
      %32 = vsyncadd [#allocation5], %s31
      %s34 = sshll.u32 %s5, 4
      %s35 = int_to_ptr.vmem [resolvable:$true] %s34
      %37 = dma.vmem_to_smem %s35, 16, [#allocation3], [#allocation5]
    $region25: #{regnn_forward.1} parent=1 // pred_fallthru
      _
    // Predicated region
    $region26: #{regnn_forward.1} parent=1 // pred_check
      _
    $region27: #{regnn_forward.1} parent=1 // pred_check_branch
      %39 = sbr.rel (0) target = $region29
    $region28: #{regnn_forward.1} parent=1 // pred_region
      _
    $region29: #{regnn_forward.1} parent=1 // pred_fallthru
      _
    // Predicated region
    $region30: #{regnn_forward.1} parent=1 // pred_check
      _
    $region31: #{regnn_forward.1} parent=1 // pred_check_branch
      %41 = sbr.rel (0) target = $region33
    $region32: #{regnn_forward.1} parent=1 // pred_region
      %42 = dma.done [#allocation5], 16
    $region33: #{regnn_forward.1} parent=1 // pred_fallthru
      _
    %43 = sfence
    %v45 = vld [vmem:[%s0] sm:$0xff]
    %v46 = vld [vmem:[%s0 + $0x8] sm:$0xff]
    %v47 = vlaneseq
    %v48 = vshrl.u32 %v47, 7
    %v49 = vadd.s32 %v48, 8
    %s50 = sld [smem:[#allocation3]]
    %v51 = vstv %s50
    %vm52 = vcmp.eq.s32.totalorder %v48, %v51
    %vm53 = vcmp.eq.s32.totalorder %v49, %v51
    %v54 = vld [vmem:[%s0 + $0x10] sm:$0x1]
    %v55 = vsel %vm52, 1, 0
    %v56 = vsel %vm53, 1, 0
    %vm57 = vcmp.eq.s32.totalorder %v55, 1
    %vm58 = vcmp.eq.s32.totalorder %v56, 1
    %v59 = vlaneseq
    %v60 = vshrl.u32 %v59, 7
    %v61 = vsub.s32 0, %v60
    %v62 = vrot.slane %v54, %v61
    %v63 = vsel %vm57, %v62, %v45
    %v64 = vsel %vm58, %v62, %v46
    %s65 = sld [smem:[#allocation3 + $0x1]]
    %v66 = vstv %s65
    %vm67 = vcmp.eq.s32.totalorder %v48, %v66
    %vm68 = vcmp.eq.s32.totalorder %v49, %v66
    %v69 = vld [vmem:[%s0 + $0x11] sm:$0x1]
    %v70 = vsel %vm67, 1, 0
    %v71 = vsel %vm68, 1, 0
    %vm72 = vcmp.eq.s32.totalorder %v70, 1
    %vm73 = vcmp.eq.s32.totalorder %v71, 1
    %v74 = vlaneseq
    %v75 = vshrl.u32 %v74, 7
    %v76 = vsub.s32 0, %v75
    %v77 = vrot.slane %v69, %v76
    %v78 = vsel %vm72, %v77, %v63
    %v79 = vsel %vm73, %v77, %v64
    %s80 = sld [smem:[#allocation3 + $0x2]]
    %v81 = vstv %s80
    %vm82 = vcmp.eq.s32.totalorder %v48, %v81
    %vm83 = vcmp.eq.s32.totalorder %v49, %v81
    %v84 = vld [vmem:[%s0 + $0x12] sm:$0x1]
    %v85 = vsel %vm82, 1, 0
    %v86 = vsel %vm83, 1, 0
    %vm87 = vcmp.eq.s32.totalorder %v85, 1
    %vm88 = vcmp.eq.s32.totalorder %v86, 1
    %v89 = vlaneseq
    %v90 = vshrl.u32 %v89, 7
    %v91 = vsub.s32 0, %v90
    %v92 = vrot.slane %v84, %v91
    %v93 = vsel %vm87, %v92, %v78
    %v94 = vsel %vm88, %v92, %v79
    %s95 = sld [smem:[#allocation3 + $0x3]]
    %v96 = vstv %s95
    %vm97 = vcmp.eq.s32.totalorder %v48, %v96
    %vm98 = vcmp.eq.s32.totalorder %v49, %v96
    %v99 = vld [vmem:[%s0 + $0x13] sm:$0x1]
    %v100 = vsel %vm97, 1, 0
    %v101 = vsel %vm98, 1, 0
    %vm102 = vcmp.eq.s32.totalorder %v100, 1
    %vm103 = vcmp.eq.s32.totalorder %v101, 1
    %v104 = vlaneseq
    %v105 = vshrl.u32 %v104, 7
    %v106 = vsub.s32 0, %v105
    %v107 = vrot.slane %v99, %v106
    %v108 = vsel %vm102, %v107, %v93
    %v109 = vsel %vm103, %v107, %v94
    %v110 = vld [vmem:[%s1] sm:$0xf]
    %v111 = vld [vmem:[%s1 + $0x4] sm:$0xf]
    %v112 = vpack.c.bf16 %v109, %v108
    %v113 = vld [vmem:[%s2] sm:$0xf]
    %v114 = vld [vmem:[%s2 + $0x4] sm:$0xf]
    %v115 = vld [vmem:[%s2 + $0x8] sm:$0xf]
    %v116 = vld [vmem:[%s2 + $0xc] sm:$0xf]
    %v117 = vld [vmem:[%s2 + $0x10] sm:$0x1]
    %v118 = vunpack.c.l.bf16 %v117
    %v123 = vunpack.c.l.b16 %v113
    %v124 = vunpack.c.l.b16 %v114
    %v125 = vunpack.c.l.b16 %v115
    %v126 = vunpack.c.l.b16 %v116
    %v127 = vpack.c.b16 %v124, %v123
    %v128 = vpack.c.b16 %v126, %v125
    %vm131 = vcmask 261120
    %v133 = vsel %vm131, %v112, 0
    %135 = vmatprep.subr.bf16.mxu0 0
    %136 = vmatpush1.bf16.msra.mxu0 %v127
    %137 = vmatprep.subr.bf16.mxu0 0
    %138 = vmatpush1.bf16.msra.mxu0 %v128
    %139 = vmatprep.subr.bf16.mxu0 0
    %140 = vmatpush1.bf16.msra.mxu0 0
    %141 = vmatprep.subr.bf16.mxu0 0
    %142 = vmatpush1.bf16.msra.mxu0 0
    %143 = vmatprep.subr.bf16.mxu0 0
    %144 = vmatpush1.bf16.msra.mxu0 0
    %145 = vmatprep.subr.bf16.mxu0 0
    %146 = vmatpush1.bf16.msra.mxu0 0
    %147 = vmatprep.subr.bf16.mxu0 0
    %148 = vmatpush1.bf16.msra.mxu0 0
    %149 = vmatprep.subr.bf16.mxu0 0
    %150 = vmatpush1.bf16.msra.mxu0 0
    %151 = vmatprep.subr.bf16.mxu0 0
    %152 = vmatpush1.bf16.msra.mxu0 0
    %153 = vmatprep.subr.bf16.mxu0 0
    %154 = vmatpush1.bf16.msra.mxu0 0
    %155 = vmatprep.subr.bf16.mxu0 0
    %156 = vmatpush1.bf16.msra.mxu0 0
    %157 = vmatprep.subr.bf16.mxu0 0
    %158 = vmatpush1.bf16.msra.mxu0 0
    %159 = vmatprep.subr.bf16.mxu0 0
    %160 = vmatpush1.bf16.msra.mxu0 0
    %161 = vmatprep.subr.bf16.mxu0 0
    %162 = vmatpush1.bf16.msra.mxu0 0
    %163 = vmatprep.subr.bf16.mxu0 0
    %164 = vmatpush1.bf16.msra.mxu0 0
    %165 = vmatprep.subr.bf16.mxu0 0
    %166 = vmatpush1.bf16.msra.mxu0 0
    %167 = vmatprep.mubr.bf16.mxu0 0
    %168 = vmatmul.mubr.bf16.gmra.mrb[0].mxu0 %v133
    %v169 = vpop.f32.mrb[0].mxu0
    %v170 = vadd.f32 0.0, %v169
    %v171 = vpop.f32.mrb[0].mxu0
    %v172 = vpop.f32.mrb[0].mxu0
    %v173 = vadd.f32 0.0, %v172
    %v174 = vpop.f32.mrb[0].mxu0
    %175 = vdwg.mxu0
    %v176 = vpack.c.bf16 %v173, %v170
    %v177 = vlaneseq
    %v178 = vshrl.u32 %v177, 7
    %v179 = vsub.s32 0, %v178
    %v180 = vrot.slane %v118, %v179
    %v183 = vunpack.c.l.b16 %v110
    %v184 = vunpack.c.l.b16 %v111
    %v185 = vpack.c.b16 %v184, %v183
    %vm186 = vcmask 130048
    %v188 = vsel %vm186, %v185, 0
    %190 = vmatprep.subr.bf16.mxu0 0
    %191 = vmatpush1.bf16.msra.mxu0 %v176
    %192 = vmatprep.subr.bf16.mxu0 0
    %193 = vmatpush1.bf16.msra.mxu0 0
    %194 = vmatprep.subr.bf16.mxu0 0
    %195 = vmatpush1.bf16.msra.mxu0 0
    %196 = vmatprep.subr.bf16.mxu0 0
    %197 = vmatpush1.bf16.msra.mxu0 0
    %198 = vmatprep.subr.bf16.mxu0 0
    %199 = vmatpush1.bf16.msra.mxu0 0
    %200 = vmatprep.subr.bf16.mxu0 0
    %201 = vmatpush1.bf16.msra.mxu0 0
    %202 = vmatprep.subr.bf16.mxu0 0
    %203 = vmatpush1.bf16.msra.mxu0 0
    %204 = vmatprep.subr.bf16.mxu0 0
    %205 = vmatpush1.bf16.msra.mxu0 0
    %206 = vmatprep.subr.bf16.mxu0 0
    %207 = vmatpush1.bf16.msra.mxu0 0
    %208 = vmatprep.subr.bf16.mxu0 0
    %209 = vmatpush1.bf16.msra.mxu0 0
    %210 = vmatprep.subr.bf16.mxu0 0
    %211 = vmatpush1.bf16.msra.mxu0 0
    %212 = vmatprep.subr.bf16.mxu0 0
    %213 = vmatpush1.bf16.msra.mxu0 0
    %214 = vmatprep.subr.bf16.mxu0 0
    %215 = vmatpush1.bf16.msra.mxu0 0
    %216 = vmatprep.subr.bf16.mxu0 0
    %217 = vmatpush1.bf16.msra.mxu0 0
    %218 = vmatprep.subr.bf16.mxu0 0
    %219 = vmatpush1.bf16.msra.mxu0 0
    %220 = vmatprep.subr.bf16.mxu0 0
    %221 = vmatpush1.bf16.msra.mxu0 0
    %222 = vmatprep.mubr.bf16.mxu0 0
    %223 = vmatmul.mubr.bf16.gmra.mrb[0].mxu0 %v188
    %v224 = vpop.f32.mrb[0].mxu0
    %v225 = vadd.f32 %v180, %v224
    %v226 = vpop.f32.mrb[0].mxu0
    %v227 = vpop.f32.mrb[0].mxu0
    %v228 = vadd.f32 %v180, %v227
    %v229 = vpop.f32.mrb[0].mxu0
    %230 = vdwg.mxu0
    %v231 = vpack.c.bf16 %v228, %v225
    %s232 = scalar_lea.vmem %s2, 20
    %v233 = vld [vmem:[%s232] sm:$0xf]
    %v234 = vld [vmem:[%s232 + $0x4] sm:$0xf]
    %v235 = vld [vmem:[%s232 + $0x8] sm:$0xf]
    %v236 = vld [vmem:[%s232 + $0xc] sm:$0xf]
    %v237 = vld [vmem:[%s232 + $0x10] sm:$0x1]
    %v238 = vunpack.c.l.bf16 %v237
    %v243 = vunpack.c.l.b16 %v233
    %v244 = vunpack.c.l.b16 %v234
    %v245 = vunpack.c.l.b16 %v235
    %v246 = vunpack.c.l.b16 %v236
    %v247 = vpack.c.b16 %v244, %v243
    %v248 = vpack.c.b16 %v246, %v245
    %v252 = vsel %vm131, %v231, 0
    %254 = vmatprep.subr.bf16.mxu0 0
    %255 = vmatpush1.bf16.msra.mxu0 %v247
    %256 = vmatprep.subr.bf16.mxu0 0
    %257 = vmatpush1.bf16.msra.mxu0 %v248
    %258 = vmatprep.subr.bf16.mxu0 0
    %259 = vmatpush1.bf16.msra.mxu0 0
    %260 = vmatprep.subr.bf16.mxu0 0
    %261 = vmatpush1.bf16.msra.mxu0 0
    %262 = vmatprep.subr.bf16.mxu0 0
    %263 = vmatpush1.bf16.msra.mxu0 0
    %264 = vmatprep.subr.bf16.mxu0 0
    %265 = vmatpush1.bf16.msra.mxu0 0
    %266 = vmatprep.subr.bf16.mxu0 0
    %267 = vmatpush1.bf16.msra.mxu0 0
    %268 = vmatprep.subr.bf16.mxu0 0
    %269 = vmatpush1.bf16.msra.mxu0 0
    %270 = vmatprep.subr.bf16.mxu0 0
    %271 = vmatpush1.bf16.msra.mxu0 0
    %272 = vmatprep.subr.bf16.mxu0 0
    %273 = vmatpush1.bf16.msra.mxu0 0
    %274 = vmatprep.subr.bf16.mxu0 0
    %275 = vmatpush1.bf16.msra.mxu0 0
    %276 = vmatprep.subr.bf16.mxu0 0
    %277 = vmatpush1.bf16.msra.mxu0 0
    %278 = vmatprep.subr.bf16.mxu0 0
    %279 = vmatpush1.bf16.msra.mxu0 0
    %280 = vmatprep.subr.bf16.mxu0 0
    %281 = vmatpush1.bf16.msra.mxu0 0
    %282 = vmatprep.subr.bf16.mxu0 0
    %283 = vmatpush1.bf16.msra.mxu0 0
    %284 = vmatprep.subr.bf16.mxu0 0
    %285 = vmatpush1.bf16.msra.mxu0 0
    %286 = vmatprep.mubr.bf16.mxu0 0
    %287 = vmatmul.mubr.bf16.gmra.mrb[0].mxu0 %v252
    %v288 = vpop.f32.mrb[0].mxu0
    %v289 = vadd.f32 0.0, %v288
    %v290 = vpop.f32.mrb[0].mxu0
    %v291 = vpop.f32.mrb[0].mxu0
    %v292 = vadd.f32 0.0, %v291
    %v293 = vpop.f32.mrb[0].mxu0
    %294 = vdwg.mxu0
    %v295 = vpack.c.bf16 %v292, %v289
    %v296 = vlaneseq
    %v297 = vshrl.u32 %v296, 7
    %v298 = vsub.s32 0, %v297
    %v299 = vrot.slane %v238, %v298
    %300 = vmatprep.subr.bf16.mxu0 0
    %301 = vmatpush1.bf16.msra.mxu0 %v295
    %302 = vmatprep.subr.bf16.mxu0 0
    %303 = vmatpush1.bf16.msra.mxu0 0
    %304 = vmatprep.subr.bf16.mxu0 0
    %305 = vmatpush1.bf16.msra.mxu0 0
    %306 = vmatprep.subr.bf16.mxu0 0
    %307 = vmatpush1.bf16.msra.mxu0 0
    %308 = vmatprep.subr.bf16.mxu0 0
    %309 = vmatpush1.bf16.msra.mxu0 0
    %310 = vmatprep.subr.bf16.mxu0 0
    %311 = vmatpush1.bf16.msra.mxu0 0
    %312 = vmatprep.subr.bf16.mxu0 0
    %313 = vmatpush1.bf16.msra.mxu0 0
    %314 = vmatprep.subr.bf16.mxu0 0
    %315 = vmatpush1.bf16.msra.mxu0 0
    %316 = vmatprep.subr.bf16.mxu0 0
    %317 = vmatpush1.bf16.msra.mxu0 0
    %318 = vmatprep.subr.bf16.mxu0 0
    %319 = vmatpush1.bf16.msra.mxu0 0
    %320 = vmatprep.subr.bf16.mxu0 0
    %321 = vmatpush1.bf16.msra.mxu0 0
    %322 = vmatprep.subr.bf16.mxu0 0
    %323 = vmatpush1.bf16.msra.mxu0 0
    %324 = vmatprep.subr.bf16.mxu0 0
    %325 = vmatpush1.bf16.msra.mxu0 0
    %326 = vmatprep.subr.bf16.mxu0 0
    %327 = vmatpush1.bf16.msra.mxu0 0
    %328 = vmatprep.subr.bf16.mxu0 0
    %329 = vmatpush1.bf16.msra.mxu0 0
    %330 = vmatprep.subr.bf16.mxu0 0
    %331 = vmatpush1.bf16.msra.mxu0 0
    %332 = vmatprep.mubr.bf16.mxu0 0
    %333 = vmatmul.mubr.bf16.gmra.mrb[0].mxu0 %v188
    %v334 = vpop.f32.mrb[0].mxu0
    %v335 = vadd.f32 %v299, %v334
    %v336 = vpop.f32.mrb[0].mxu0
    %v337 = vpop.f32.mrb[0].mxu0
    %v338 = vadd.f32 %v299, %v337
    %v339 = vpop.f32.mrb[0].mxu0
    %340 = vdwg.mxu0
    %v341 = vpack.c.bf16 %v338, %v335
    %v342 = vlaneseq
    %v343 = vand.u32 %v342, 127
    %vm344 = vcmp.eq.s32.totalorder %v48, 0
    %vm345 = vcmp.eq.s32.totalorder %v343, %v51
    %vm346 = vmand %vm344, %vm345
    %v347 = vsel %vm346, 1.0, 0.0
    %vm348 = vcmp.eq.s32.totalorder %v48, 1
    %vm349 = vcmp.eq.s32.totalorder %v343, %v66
    %vm350 = vmand %vm348, %vm349
    %v351 = vsel %vm350, 1.0, %v347
    %vm352 = vcmp.eq.s32.totalorder %v48, 2
    %vm353 = vcmp.eq.s32.totalorder %v343, %v81
    %vm354 = vmand %vm352, %vm353
    %v355 = vsel %vm354, 1.0, %v351
    %vm356 = vcmp.eq.s32.totalorder %v48, 3
    %vm357 = vcmp.eq.s32.totalorder %v343, %v96
    %vm358 = vmand %vm356, %vm357
    %v359 = vsel %vm358, 1.0, %v355
    %v360 = vpack.c.bf16 %v359, %v359
    %v362 = vsel %vm186, %v360, 0
    %364 = vmatprep.subr.bf16.mxu0 0
    %365 = vmatpush1.bf16.msra.mxu0 %v341
    %366 = vmatprep.subr.bf16.mxu0 0
    %367 = vmatpush1.bf16.msra.mxu0 0
    %368 = vmatprep.subr.bf16.mxu0 0
    %369 = vmatpush1.bf16.msra.mxu0 0
    %370 = vmatprep.subr.bf16.mxu0 0
    %371 = vmatpush1.bf16.msra.mxu0 0
    %372 = vmatprep.subr.bf16.mxu0 0
    %373 = vmatpush1.bf16.msra.mxu0 0
    %374 = vmatprep.subr.bf16.mxu0 0
    %375 = vmatpush1.bf16.msra.mxu0 0
    %376 = vmatprep.subr.bf16.mxu0 0
    %377 = vmatpush1.bf16.msra.mxu0 0
    %378 = vmatprep.subr.bf16.mxu0 0
    %379 = vmatpush1.bf16.msra.mxu0 0
    %380 = vmatprep.subr.bf16.mxu0 0
    %381 = vmatpush1.bf16.msra.mxu0 0
    %382 = vmatprep.subr.bf16.mxu0 0
    %383 = vmatpush1.bf16.msra.mxu0 0
    %384 = vmatprep.subr.bf16.mxu0 0
    %385 = vmatpush1.bf16.msra.mxu0 0
    %386 = vmatprep.subr.bf16.mxu0 0
    %387 = vmatpush1.bf16.msra.mxu0 0
    %388 = vmatprep.subr.bf16.mxu0 0
    %389 = vmatpush1.bf16.msra.mxu0 0
    %390 = vmatprep.subr.bf16.mxu0 0
    %391 = vmatpush1.bf16.msra.mxu0 0
    %392 = vmatprep.subr.bf16.mxu0 0
    %393 = vmatpush1.bf16.msra.mxu0 0
    %394 = vmatprep.subr.bf16.mxu0 0
    %395 = vmatpush1.bf16.msra.mxu0 0
    %396 = vmatprep.mubr.bf16.mxu0 0
    %397 = vmatmul.mubr.bf16.gmra.mrb[0].mxu0 %v362
    %v398 = vpop.f32.mrb[0].mxu0
    %v399 = vadd.f32 0.0, %v398
    %v400 = vpop.f32.mrb[0].mxu0
    %v401 = vpop.f32.mrb[0].mxu0
    %v402 = vpop.f32.mrb[0].mxu0
    %403 = vdwg.mxu0
    %v404 = vpack.c.bf16 %v399, %v399
    %v405 = vld [vmem:[%s3] sm:$0xff]
    %v406 = vld [vmem:[%s3 + $0x8] sm:$0xf]
    %v407 = vld [vmem:[%s3 + $0xc] sm:$0xff]
    %v408 = vld [vmem:[%s3 + $0x14] sm:$0xf]
    %v409 = vld [vmem:[%s3 + $0x18] sm:$0xff]
    %v410 = vld [vmem:[%s3 + $0x20] sm:$0xf]
    %v411 = vld [vmem:[%s3 + $0x24] sm:$0xff]
    %v412 = vld [vmem:[%s3 + $0x2c] sm:$0xf]
    %v421 = vunpack.c.l.b16 %v405
    %v422 = vunpack.c.h.b16 %v405
    %v423 = vunpack.c.l.b16 %v406
    %v424 = vunpack.c.l.b16 %v407
    %v425 = vunpack.c.h.b16 %v407
    %v426 = vunpack.c.l.b16 %v408
    %v427 = vunpack.c.l.b16 %v409
    %v428 = vunpack.c.h.b16 %v409
    %v429 = vunpack.c.l.b16 %v410
    %v430 = vunpack.c.l.b16 %v411
    %v431 = vunpack.c.h.b16 %v411
    %v432 = vunpack.c.l.b16 %v412
    %v433 = vpack.c.b16 %v424, %v421
    %v434 = vpack.c.b16 %v425, %v422
    %v435 = vpack.c.b16 %v426, %v423
    %v436 = vpack.c.b16 %v430, %v427
    %v437 = vpack.c.b16 %v431, %v428
    %v438 = vpack.c.b16 %v432, %v429
    %v446 = vsel %vm131, %v404, 0
    %448 = vmatprep.subr.bf16.mxu0 %v434
    %449 = vmatpush1.bf16.msra.mxu0 %v433
    %450 = vmatprep.subr.bf16.mxu0 %v437
    %451 = vmatpush1.bf16.msra.mxu0 %v436
    %452 = vmatprep.subr.bf16.mxu0 0
    %453 = vmatpush1.bf16.msra.mxu0 0
    %454 = vmatprep.subr.bf16.mxu0 0
    %455 = vmatpush1.bf16.msra.mxu0 0
    %456 = vmatprep.subr.bf16.mxu0 0
    %457 = vmatpush1.bf16.msra.mxu0 0
    %458 = vmatprep.subr.bf16.mxu0 0
    %459 = vmatpush1.bf16.msra.mxu0 0
    %460 = vmatprep.subr.bf16.mxu0 0
    %461 = vmatpush1.bf16.msra.mxu0 0
    %462 = vmatprep.subr.bf16.mxu0 0
    %463 = vmatpush1.bf16.msra.mxu0 0
    %464 = vmatprep.subr.bf16.mxu0 0
    %465 = vmatpush1.bf16.msra.mxu0 0
    %466 = vmatprep.subr.bf16.mxu0 0
    %467 = vmatpush1.bf16.msra.mxu0 0
    %468 = vmatprep.subr.bf16.mxu0 0
    %469 = vmatpush1.bf16.msra.mxu0 0
    %470 = vmatprep.subr.bf16.mxu0 0
    %471 = vmatpush1.bf16.msra.mxu0 0
    %472 = vmatprep.subr.bf16.mxu0 0
    %473 = vmatpush1.bf16.msra.mxu0 0
    %474 = vmatprep.subr.bf16.mxu0 0
    %475 = vmatpush1.bf16.msra.mxu0 0
    %476 = vmatprep.subr.bf16.mxu0 0
    %477 = vmatpush1.bf16.msra.mxu0 0
    %478 = vmatprep.subr.bf16.mxu0 0
    %479 = vmatpush1.bf16.msra.mxu0 0
    %480 = vmatprep.mubr.bf16.mxu0 0
    %481 = vmatmul.mubr.bf16.gmra.mrb[0].mxu0 %v446
    %v482 = vpop.f32.mrb[0].mxu0
    %v483 = vadd.f32 0.0, %v482
    %v484 = vpop.f32.mrb[0].mxu0
    %v485 = vadd.f32 0.0, %v484
    %v486 = vpop.f32.mrb[0].mxu0
    %v487 = vpop.f32.mrb[0].mxu0
    %488 = vdwg.mxu0
    %489 = vmatprep.subr.bf16.mxu0 0
    %490 = vmatpush1.bf16.msra.mxu0 %v435
    %491 = vmatprep.subr.bf16.mxu0 0
    %492 = vmatpush1.bf16.msra.mxu0 %v438
    %493 = vmatprep.subr.bf16.mxu0 0
    %494 = vmatpush1.bf16.msra.mxu0 0
    %495 = vmatprep.subr.bf16.mxu0 0
    %496 = vmatpush1.bf16.msra.mxu0 0
    %497 = vmatprep.subr.bf16.mxu0 0
    %498 = vmatpush1.bf16.msra.mxu0 0
    %499 = vmatprep.subr.bf16.mxu0 0
    %500 = vmatpush1.bf16.msra.mxu0 0
    %501 = vmatprep.subr.bf16.mxu0 0
    %502 = vmatpush1.bf16.msra.mxu0 0
    %503 = vmatprep.subr.bf16.mxu0 0
    %504 = vmatpush1.bf16.msra.mxu0 0
    %505 = vmatprep.subr.bf16.mxu0 0
    %506 = vmatpush1.bf16.msra.mxu0 0
    %507 = vmatprep.subr.bf16.mxu0 0
    %508 = vmatpush1.bf16.msra.mxu0 0
    %509 = vmatprep.subr.bf16.mxu0 0
    %510 = vmatpush1.bf16.msra.mxu0 0
    %511 = vmatprep.subr.bf16.mxu0 0
    %512 = vmatpush1.bf16.msra.mxu0 0
    %513 = vmatprep.subr.bf16.mxu0 0
    %514 = vmatpush1.bf16.msra.mxu0 0
    %515 = vmatprep.subr.bf16.mxu0 0
    %516 = vmatpush1.bf16.msra.mxu0 0
    %517 = vmatprep.subr.bf16.mxu0 0
    %518 = vmatpush1.bf16.msra.mxu0 0
    %519 = vmatprep.subr.bf16.mxu0 0
    %520 = vmatpush1.bf16.msra.mxu0 0
    %521 = vmatprep.mubr.bf16.mxu0 0
    %522 = vmatmul.mubr.bf16.gmra.mrb[0].mxu0 %v446
    %v523 = vpop.f32.mrb[0].mxu0
    %v524 = vadd.f32 0.0, %v523
    %v525 = vpop.f32.mrb[0].mxu0
    %v526 = vpop.f32.mrb[0].mxu0
    %v527 = vpop.f32.mrb[0].mxu0
    %528 = vdwg.mxu0
    %530 = vrot.lane.b32.xlu0 %v399, 32
    %v531 = vpop.permute.xlu0 %530
    %533 = vrot.lane.b32.xlu0 %v399, 64
    %v534 = vpop.permute.xlu0 %533
    %536 = vrot.lane.b32.xlu0 %v399, 96
    %v537 = vpop.permute.xlu0 %536
    %v539 = vsel %vm131, %v399, %v531
    %vm540 = vcmask 523264
    %v541 = vsel %vm540, %v539, %v534
    %vm542 = vcmask 785408
    %v543 = vsel %vm542, %v541, %v537
    %v546 = vrot.slane %v543, 2
    %v547 = vrot.slane %v539, 2
    %v550 = vmul.f32 %v483, %v546
    %v551 = vmul.f32 %v485, %v546
    %v552 = vmul.f32 %v524, %v547
    %v553 = vrot.slane %v399, 2
    %554 = vrot.lane.b32.xlu0 %v553, 96
    %v555 = vpop.permute.xlu0 %554
    %v557 = vsel %vm540, %v552, %v534
    %v558 = vsel %vm542, %v557, %v555
    %v559 = vpack.c.bf16 %v550, %v550
    %v560 = vpack.c.bf16 %v551, %v551
    %v561 = vpack.c.bf16 %v558, %v558
    %v562 = vld [vmem:[%s4] sm:$0xf]
    %v563 = vld [vmem:[%s4 + $0x4] sm:$0xf]
    %v564 = vld [vmem:[%s4 + $0x8] sm:$0xf]
    %v565 = vld [vmem:[%s4 + $0xc] sm:$0xf]
    %v566 = vld [vmem:[%s4 + $0x10] sm:$0xf]
    %v567 = vld [vmem:[%s4 + $0x14] sm:$0xf]
    %v568 = vld [vmem:[%s4 + $0x18] sm:$0xf]
    %v569 = vld [vmem:[%s4 + $0x1c] sm:$0xf]
    %v570 = vld [vmem:[%s4 + $0x20] sm:$0xf]
    %v571 = vld [vmem:[%s4 + $0x24] sm:$0xf]
    %v572 = vld [vmem:[%s4 + $0x28] sm:$0xf]
    %v573 = vld [vmem:[%s4 + $0x2c] sm:$0xf]
    %v574 = vld [vmem:[%s4 + $0x30] sm:$0xf]
    %v575 = vld [vmem:[%s4 + $0x34] sm:$0xf]
    %v576 = vld [vmem:[%s4 + $0x38] sm:$0xf]
    %v577 = vld [vmem:[%s4 + $0x3c] sm:$0xf]
    %v578 = vld [vmem:[%s4 + $0x40] sm:$0xf]
    %v579 = vld [vmem:[%s4 + $0x44] sm:$0xf]
    %v580 = vld [vmem:[%s4 + $0x48] sm:$0xf]
    %v581 = vld [vmem:[%s4 + $0x4c] sm:$0xf]
    %v582 = vld [vmem:[%s4 + $0x50] sm:$0xf]
    %v583 = vld [vmem:[%s4 + $0x54] sm:$0xf]
    %v584 = vld [vmem:[%s4 + $0x58] sm:$0xf]
    %v585 = vld [vmem:[%s4 + $0x5c] sm:$0xf]
    %v586 = vld [vmem:[%s4 + $0x60] sm:$0xf]
    %v587 = vld [vmem:[%s4 + $0x64] sm:$0xf]
    %v588 = vld [vmem:[%s4 + $0x68] sm:$0xf]
    %v589 = vld [vmem:[%s4 + $0x6c] sm:$0xf]
    %v590 = vld [vmem:[%s4 + $0x70] sm:$0xf]
    %v591 = vld [vmem:[%s4 + $0x74] sm:$0xf]
    %v592 = vld [vmem:[%s4 + $0x78] sm:$0xf]
    %v593 = vld [vmem:[%s4 + $0x7c] sm:$0xf]
    %v594 = vld [vmem:[%s4 + $0x80] sm:$0xf]
    %v595 = vld [vmem:[%s4 + $0x84] sm:$0xf]
    %v596 = vld [vmem:[%s4 + $0x88] sm:$0xf]
    %v597 = vld [vmem:[%s4 + $0x8c] sm:$0xf]
    %v598 = vld [vmem:[%s4 + $0x90] sm:$0xf]
    %v599 = vld [vmem:[%s4 + $0x94] sm:$0xf]
    %v600 = vld [vmem:[%s4 + $0x98] sm:$0xf]
    %v601 = vld [vmem:[%s4 + $0x9c] sm:$0xf]
    %v602 = vld [vmem:[%s4 + $0xa0] sm:$0xf]
    %v603 = vld [vmem:[%s4 + $0xa4] sm:$0xf]
    %v604 = vld [vmem:[%s4 + $0xa8] sm:$0xf]
    %v605 = vld [vmem:[%s4 + $0xac] sm:$0xf]
    %v606 = vld [vmem:[%s4 + $0xb0] sm:$0xf]
    %v607 = vld [vmem:[%s4 + $0xb4] sm:$0xf]
    %v608 = vld [vmem:[%s4 + $0xb8] sm:$0xf]
    %v609 = vld [vmem:[%s4 + $0xbc] sm:$0xf]
    %v610 = vld [vmem:[%s4 + $0xc0] sm:$0x1]
    %v611 = vunpack.c.l.bf16 %v610
    %v612 = vlaneseq
    %v613 = vshrl.u32 %v612, 7
    %v614 = vsub.s32 0, %v613
    %v615 = vrot.slane %v611, %v614
    %v664 = vunpack.c.l.b16 %v562
    %v665 = vunpack.c.l.b16 %v563
    %v666 = vunpack.c.l.b16 %v564
    %v667 = vunpack.c.l.b16 %v565
    %v668 = vunpack.c.l.b16 %v566
    %v669 = vunpack.c.l.b16 %v567
    %v670 = vunpack.c.l.b16 %v568
    %v671 = vunpack.c.l.b16 %v569
    %v672 = vunpack.c.l.b16 %v570
    %v673 = vunpack.c.l.b16 %v571
    %v674 = vunpack.c.l.b16 %v572
    %v675 = vunpack.c.l.b16 %v573
    %v676 = vunpack.c.l.b16 %v574
    %v677 = vunpack.c.l.b16 %v575
    %v678 = vunpack.c.l.b16 %v576
    %v679 = vunpack.c.l.b16 %v577
    %v680 = vunpack.c.l.b16 %v578
    %v681 = vunpack.c.l.b16 %v579
    %v682 = vunpack.c.l.b16 %v580
    %v683 = vunpack.c.l.b16 %v581
    %v684 = vunpack.c.l.b16 %v582
    %v685 = vunpack.c.l.b16 %v583
    %v686 = vunpack.c.l.b16 %v584
    %v687 = vunpack.c.l.b16 %v585
    %v688 = vunpack.c.l.b16 %v586
    %v689 = vunpack.c.l.b16 %v587
    %v690 = vunpack.c.l.b16 %v588
    %v691 = vunpack.c.l.b16 %v589
    %v692 = vunpack.c.l.b16 %v590
    %v693 = vunpack.c.l.b16 %v591
    %v694 = vunpack.c.l.b16 %v592
    %v695 = vunpack.c.l.b16 %v593
    %v696 = vunpack.c.l.b16 %v594
    %v697 = vunpack.c.l.b16 %v595
    %v698 = vunpack.c.l.b16 %v596
    %v699 = vunpack.c.l.b16 %v597
    %v700 = vunpack.c.l.b16 %v598
    %v701 = vunpack.c.l.b16 %v599
    %v702 = vunpack.c.l.b16 %v600
    %v703 = vunpack.c.l.b16 %v601
    %v704 = vunpack.c.l.b16 %v602
    %v705 = vunpack.c.l.b16 %v603
    %v706 = vunpack.c.l.b16 %v604
    %v707 = vunpack.c.l.b16 %v605
    %v708 = vunpack.c.l.b16 %v606
    %v709 = vunpack.c.l.b16 %v607
    %v710 = vunpack.c.l.b16 %v608
    %v711 = vunpack.c.l.b16 %v609
    %v712 = vpack.c.b16 %v665, %v664
    %v713 = vpack.c.b16 %v667, %v666
    %v714 = vpack.c.b16 %v669, %v668
    %v715 = vpack.c.b16 %v671, %v670
    %v716 = vpack.c.b16 %v673, %v672
    %v717 = vpack.c.b16 %v675, %v674
    %v718 = vpack.c.b16 %v677, %v676
    %v719 = vpack.c.b16 %v679, %v678
    %v720 = vpack.c.b16 %v681, %v680
    %v721 = vpack.c.b16 %v683, %v682
    %v722 = vpack.c.b16 %v685, %v684
    %v723 = vpack.c.b16 %v687, %v686
    %v724 = vpack.c.b16 %v689, %v688
    %v725 = vpack.c.b16 %v691, %v690
    %v726 = vpack.c.b16 %v693, %v692
    %v727 = vpack.c.b16 %v695, %v694
    %v728 = vpack.c.b16 %v697, %v696
    %v729 = vpack.c.b16 %v699, %v698
    %v730 = vpack.c.b16 %v701, %v700
    %v731 = vpack.c.b16 %v703, %v702
    %v732 = vpack.c.b16 %v705, %v704
    %v733 = vpack.c.b16 %v707, %v706
    %v734 = vpack.c.b16 %v709, %v708
    %v735 = vpack.c.b16 %v711, %v710
    %760 = vmatprep.subr.bf16.mxu0 0
    %761 = vmatpush1.bf16.msra.mxu0 %v712
    %762 = vmatprep.subr.bf16.mxu0 0
    %763 = vmatpush1.bf16.msra.mxu0 %v713
    %764 = vmatprep.subr.bf16.mxu0 0
    %765 = vmatpush1.bf16.msra.mxu0 %v714
    %766 = vmatprep.subr.bf16.mxu0 0
    %767 = vmatpush1.bf16.msra.mxu0 %v715
    %768 = vmatprep.subr.bf16.mxu0 0
    %769 = vmatpush1.bf16.msra.mxu0 %v716
    %770 = vmatprep.subr.bf16.mxu0 0
    %771 = vmatpush1.bf16.msra.mxu0 %v717
    %772 = vmatprep.subr.bf16.mxu0 0
    %773 = vmatpush1.bf16.msra.mxu0 %v718
    %774 = vmatprep.subr.bf16.mxu0 0
    %775 = vmatpush1.bf16.msra.mxu0 %v719
    %776 = vmatprep.subr.bf16.mxu0 0
    %777 = vmatpush1.bf16.msra.mxu0 %v720
    %778 = vmatprep.subr.bf16.mxu0 0
    %779 = vmatpush1.bf16.msra.mxu0 %v721
    %780 = vmatprep.subr.bf16.mxu0 0
    %781 = vmatpush1.bf16.msra.mxu0 %v722
    %782 = vmatprep.subr.bf16.mxu0 0
    %783 = vmatpush1.bf16.msra.mxu0 %v723
    %784 = vmatprep.subr.bf16.mxu0 0
    %785 = vmatpush1.bf16.msra.mxu0 %v724
    %786 = vmatprep.subr.bf16.mxu0 0
    %787 = vmatpush1.bf16.msra.mxu0 %v725
    %788 = vmatprep.subr.bf16.mxu0 0
    %789 = vmatpush1.bf16.msra.mxu0 %v726
    %790 = vmatprep.subr.bf16.mxu0 0
    %791 = vmatpush1.bf16.msra.mxu0 %v727
    %792 = vmatprep.mubr.bf16.mxu0 %v560
    %793 = vmatmul.mubr.bf16.gmra.mrb[0].mxu0 %v559
    %v794 = vpop.f32.mrb[0].mxu0
    %v795 = vadd.f32 %v615, %v794
    %v796 = vpop.f32.mrb[0].mxu0
    %v797 = vpop.f32.mrb[0].mxu0
    %v798 = vpop.f32.mrb[0].mxu0
    %799 = vdwg.mxu0
    %800 = vmatprep.subr.bf16.mxu0 0
    %801 = vmatpush1.bf16.msra.mxu0 %v728
    %802 = vmatprep.subr.bf16.mxu0 0
    %803 = vmatpush1.bf16.msra.mxu0 %v729
    %804 = vmatprep.subr.bf16.mxu0 0
    %805 = vmatpush1.bf16.msra.mxu0 %v730
    %806 = vmatprep.subr.bf16.mxu0 0
    %807 = vmatpush1.bf16.msra.mxu0 %v731
    %808 = vmatprep.subr.bf16.mxu0 0
    %809 = vmatpush1.bf16.msra.mxu0 %v732
    %810 = vmatprep.subr.bf16.mxu0 0
    %811 = vmatpush1.bf16.msra.mxu0 %v733
    %812 = vmatprep.subr.bf16.mxu0 0
    %813 = vmatpush1.bf16.msra.mxu0 %v734
    %814 = vmatprep.subr.bf16.mxu0 0
    %815 = vmatpush1.bf16.msra.mxu0 %v735
    %816 = vmatprep.subr.bf16.mxu0 0
    %817 = vmatpush1.bf16.msra.mxu0 0
    %818 = vmatprep.subr.bf16.mxu0 0
    %819 = vmatpush1.bf16.msra.mxu0 0
    %820 = vmatprep.subr.bf16.mxu0 0
    %821 = vmatpush1.bf16.msra.mxu0 0
    %822 = vmatprep.subr.bf16.mxu0 0
    %823 = vmatpush1.bf16.msra.mxu0 0
    %824 = vmatprep.subr.bf16.mxu0 0
    %825 = vmatpush1.bf16.msra.mxu0 0
    %826 = vmatprep.subr.bf16.mxu0 0
    %827 = vmatpush1.bf16.msra.mxu0 0
    %828 = vmatprep.subr.bf16.mxu0 0
    %829 = vmatpush1.bf16.msra.mxu0 0
    %830 = vmatprep.subr.bf16.mxu0 0
    %831 = vmatpush1.bf16.msra.mxu0 0
    %832 = vmatprep.mubr.bf16.mxu0 0
    %833 = vmatmul.mubr.bf16.gmra.mrb[0].mxu0 %v561
    %v834 = vpop.f32.mrb[0].mxu0
    %v835 = vadd.f32 %v795, %v834
    %v836 = vpop.f32.mrb[0].mxu0
    %v837 = vpop.f32.mrb[0].mxu0
    %v838 = vpop.f32.mrb[0].mxu0
    %839 = vdwg.mxu0
    %vm840 = vcmask 74752
    %841 = vst.msk [vmem:[#allocation6] sm:$0x3] %vm840, %v835
    %v842 = vsel %vm840, %v835, -inf
    %843 = vmax.xlane.f32.xlu0 %v842
    %v844 = vpop.xlane.xlu0 %843
    %v845 = vsub.f32 %v835, %v844
    %v846 = vmul.f32 %v845, 1.442695
    %v847 = vpow.pop %v846
    %v848 = vsel %vm840, %v847, 0.0
    %849 = vadd.xlane.f32.xlu0 %v848
    %v850 = vpop.xlane.xlu0 %849
    %v851 = vlog2.pop %v850
    %v852 = vmul.f32 %v851, 0.6931472
    %v853 = vadd.f32 %v844, %v852
    %s854 = sld [smem:[#allocation3 + $0x4]]
    %v855 = vstv %s854
    %vm856 = vcmp.eq.s32.totalorder %v343, %v855
    %vm857 = vmand %vm344, %vm856
    %v858 = vsel %vm857, 1.0, 0.0
    %s859 = sld [smem:[#allocation3 + $0x5]]
    %v860 = vstv %s859
    %vm861 = vcmp.eq.s32.totalorder %v343, %v860
    %vm862 = vmand %vm348, %vm861
    %v863 = vsel %vm862, 1.0, %v858
    %v864 = vmul.f32 %v835, %v863
    %v865 = vsel %vm840, %v864, 0.0
    %866 = vadd.xlane.f32.xlu0 %v865
    %v867 = vpop.xlane.xlu0 %866
    %v868 = vsub.f32 %v853, %v867
    %vm869 = vcmask 1041408
    %v870 = vsel %vm869, %v868, 0.0
    %v871 = vrot.slane %v870, 4
    %v872 = vadd.f32 %v870, %v871
    %v873 = vrot.slane %v872, 2
    %v874 = vadd.f32 %v872, %v873
    %v875 = vrot.slane %v874, 1
    %v876 = vadd.f32 %v874, %v875
    %v877 = vmul.f32 %v876, 0.5
    %s878 = sld [smem:[#allocation2]]
    %s879 = smul.f32 %s878, 0.5
    %v880 = vmul.f32 %v877, 0.5
    %v881 = vstv %s879
    %v882 = vadd.f32 %v881, %v880
    %vm883 = vcmask 0
    %884 = vst.msk [vmem:[#allocation7] sm:$0x1] %vm883, %v882
    // Predicated region
    $region34: #{regnn_forward.1} parent=1 // pred_check
      _
    $region35: #{regnn_forward.1} parent=1 // pred_check_branch
      %886 = sbr.rel (0) target = $region37
    $region36: #{regnn_forward.1} parent=1 // pred_region
      %s888 = ssub.s32 32, 32
      %889 = vsyncadd [#allocation4], %s888
      %s891 = sshll.u32 [#allocation6], 4
      %s892 = int_to_ptr.vmem [resolvable:$true] %s891
      %894 = dma.vmem_to_hbm [thread:$0]  %s892, 32, %s7, [#allocation4]
    $region37: #{regnn_forward.1} parent=1 // pred_fallthru
      _
    // Predicated region
    $region38: #{regnn_forward.1} parent=1 // pred_check
      _
    $region39: #{regnn_forward.1} parent=1 // pred_check_branch
      %896 = sbr.rel (0) target = $region41
    $region40: #{regnn_forward.1} parent=1 // pred_region
      %s898 = ssub.s32 16, 16
      %899 = vsyncadd [#allocation8], %s898
      %s901 = sshll.u32 [#allocation7], 4
      %s902 = int_to_ptr.vmem [resolvable:$true] %s901
      %904 = dma.vmem_to_hbm [thread:$0]  %s902, 16, %s8, [#allocation8]
    $region41: #{regnn_forward.1} parent=1 // pred_fallthru
      _
    // Predicated region
    $region42: #{regnn_forward.1} parent=1 // pred_check
      _
    $region43: #{regnn_forward.1} parent=1 // pred_check_branch
      %906 = sbr.rel (0) target = $region45
    $region44: #{regnn_forward.1} parent=1 // pred_region
      %907 = dma.done [#allocation4], 32
    $region45: #{regnn_forward.1} parent=1 // pred_fallthru
      _
    // Predicated region
    $region46: #{regnn_forward.1} parent=1 // pred_check
      _
    $region47: #{regnn_forward.1} parent=1 // pred_check_branch
      %909 = sbr.rel (0) target = $region49
    $region48: #{regnn_forward.1} parent=1 // pred_region
      %910 = dma.done [#allocation8], 16
    $region49: #{regnn_forward.1} parent=1 // pred_fallthru
      _
    %911 = vsyncpa [#allocation4], 1
    %912 = vsyncpa [#allocation8], 1
    %913 = vsyncpa [#allocation5], 1

</llo_original>
